<compile_context>
chip_gen: v7x
topology: tpu7x:2x2x1
jax: 0.10.0
libtpu: 0.0.40
codegen_flags: <defaults>
</compile_context>

<pallas_src>
import functools

import numpy as np
import jax
import jax.numpy as jnp
from jax.experimental import pallas as pl
from jax.experimental.pallas import tpu as pltpu

N_QUBITS = 6
DIM = 2 ** N_QUBITS          # 64


def _round_up(a, m):
    return ((a + m - 1) // m) * m


# ---------------------------------------------------------------------------
# Host-side (glue): fixed part of the quantum circuit as a 64x64 unitary.
# ---------------------------------------------------------------------------
def _kron_layer(gates):
    m = gates[0]
    for g in gates[1:]:
        m = np.kron(m, g)
    return m


def build_fixed_unitary(qw):
    """qw: (5, 6) numpy array of circuit weights. Returns complex (64, 64)."""
    n = N_QUBITS

    def RX(t):
        c, s = np.cos(t / 2), np.sin(t / 2)
        return np.array([[c, -1j * s], [-1j * s, c]], dtype=np.complex128)

    def RY(t):
        c, s = np.cos(t / 2), np.sin(t / 2)
        return np.array([[c, -s], [s, c]], dtype=np.complex128)

    def RZ(t):
        return np.array([[np.exp(-1j * t / 2), 0], [0, np.exp(1j * t / 2)]],
                        dtype=np.complex128)

    def CNOT(ctrl, tgt):
        m = np.zeros((DIM, DIM), dtype=np.complex128)
        for k in range(DIM):
            if (k >> (n - 1 - ctrl)) & 1:
                j = k ^ (1 << (n - 1 - tgt))
            else:
                j = k
            m[j, k] = 1.0
        return m

    # layer 2: RX(w0) then RZ(w1) per qubit
    u1 = _kron_layer([RZ(qw[1, i]) @ RX(qw[0, i]) for i in range(n)])
    # layer 3: CNOT ring (0,1),(1,2),...,(4,5),(5,0) applied in order
    u2 = np.eye(DIM, dtype=np.complex128)
    for i in range(n - 1):
        u2 = CNOT(i, i + 1) @ u2
    u2 = CNOT(n - 1, 0) @ u2
    # layer 4: RY(w2) then RZ(w3) per qubit
    u3 = _kron_layer([RZ(qw[3, i]) @ RY(qw[2, i]) for i in range(n)])
    # layer 5: CNOT on (0,1),(2,3),(4,5)
    u4 = np.eye(DIM, dtype=np.complex128)
    for i in range(0, n, 2):
        u4 = CNOT(i, (i + 1) % n) @ u4
    # layer 6: RX(w4) per qubit
    u5 = _kron_layer([RX(qw[4, i]) for i in range(n)])
    return u5 @ u4 @ u3 @ u2 @ u1


def build_pauliz_matrix():
    """zmat[k, i] = <k| Z_i |k>  -> shape (64, 6)."""
    z = np.zeros((DIM, N_QUBITS), dtype=np.float32)
    for k in range(DIM):
        for i in range(N_QUBITS):
            z[k, i] = 1.0 - 2.0 * ((k >> (N_QUBITS - 1 - i)) & 1)
    return z


def build_bit_masks():
    """bits[i, k] = i-th qubit's bit of basis state k, rows 6..7 zero padding."""
    bits = np.zeros((8, DIM), dtype=np.float32)
    for i in range(N_QUBITS):
        for k in range(DIM):
            bits[i, k] = float((k >> (N_QUBITS - 1 - i)) & 1)
    return bits


def prepare_kernel_params(raw):
    """Pack weights/constants into 4 lane-friendly slabs + static metadata.

    raw holds: w1,b1,w2,b2,w3,b3 (pre-MLP), uret,uimt (64,64 each), zmat (64,6),
    w4,b4,w5,b5 (post-MLP).
    """
    n_sym = raw["w1"].shape[0]
    n_dep = raw["w5"].shape[1]
    out_w = max(8, _round_up(n_dep, 8))

    # --- pre-MLP slab: w1,b1,w2,b2,w3,b3 at 8-aligned row offsets, 32 lanes. ---
    r_b1 = _round_up(n_sym, 8)
    r_w2 = r_b1 + 8
    r_b2 = r_w2 + 32
    r_w3 = r_b2 + 8
    r_b3 = r_w3 + 16
    pre_rows = _round_up(r_b3 + 1, 8)
    pre_slab = jnp.zeros((pre_rows, 32), jnp.float32)
    pre_slab = pre_slab.at[0:n_sym, :].set(raw["w1"])
    pre_slab = pre_slab.at[r_b1, :].set(raw["b1"][0])
    pre_slab = pre_slab.at[r_w2:r_w2 + 32, 0:16].set(raw["w2"])
    pre_slab = pre_slab.at[r_b2, 0:16].set(raw["b2"][0])
    pre_slab = pre_slab.at[r_w3:r_w3 + 16, 0:N_QUBITS].set(raw["w3"])
    pre_slab = pre_slab.at[r_b3, 0:N_QUBITS].set(raw["b3"][0])

    # --- (64, 128): psi0 @ [Re(U)^T | Im(U)^T] as one lane-dense MXU matmul. ---
    u_cat = jnp.concatenate([raw["uret"], raw["uimt"]], axis=1)

    # --- post slab: fused PauliZ contraction + first post Linear (zw4), b4,
    #     and the final Linear padded to out_w lanes, all 8-aligned rows. ---
    zmat2 = jnp.concatenate([raw["zmat"], raw["zmat"]], axis=0)    # (128, 6)
    zw4 = zmat2 @ raw["w4"]                                        # (128, 16)
    r_b4 = 2 * DIM             # 128
    r_w5 = r_b4 + 8            # 136
    r_b5 = r_w5 + 16           # 152
    post_rows = _round_up(r_b5 + 1, 8)                             # 160
    post_w = max(16, out_w)
    post_slab = jnp.zeros((post_rows, post_w), jnp.float32)
    post_slab = post_slab.at[0:2 * DIM, 0:16].set(zw4)
    post_slab = post_slab.at[r_b4, 0:16].set(raw["b4"][0])
    post_slab = post_slab.at[r_w5:r_w5 + 16, 0:n_dep].set(raw["w5"])
    post_slab = post_slab.at[r_b5, 0:n_dep].set(raw["b5"][0])

    bits = jnp.asarray(build_bit_masks())                          # (8, 64)

    return {
        "pre_slab": pre_slab, "bits": bits, "u_cat": u_cat,
        "post_slab": post_slab,
        "meta": {
            "n_dep": n_dep, "out_w": out_w,
            "offsets": dict(r_b1=r_b1, r_w2=r_w2, r_b2=r_b2, r_w3=r_w3,
                            r_b3=r_b3, r_b4=r_b4, r_w5=r_w5, r_b5=r_b5),
        },
    }


# ---------------------------------------------------------------------------
# Pallas kernel: pre-MLP -> quantum state-vector sim -> fused Z/w4 -> post-MLP.
# ---------------------------------------------------------------------------
def quantum_cnn_kernel(x_ref, pre_ref, bits_ref, ucat_ref, post_ref, out_ref,
                       *, n_sym, out_w, r_b1, r_w2, r_b2, r_w3, r_b3,
                       r_b4, r_w5, r_b5):
    x = x_ref[...]

    slab = pre_ref[...]                                # (pre_rows, 32), 8-aligned slices
    w1 = slab[0:n_sym, :]
    b1 = slab[r_b1:r_b1 + 1, :]
    w2 = slab[r_w2:r_w2 + 32, 0:16]
    b2 = slab[r_b2:r_b2 + 1, 0:16]
    w3 = slab[r_w3:r_w3 + 16, 0:N_QUBITS]
    b3 = slab[r_b3:r_b3 + 1, 0:N_QUBITS]

    # pre_process: Linear -> ReLU -> Dropout -> Linear -> ReLU -> Linear -> Tanh
    h = jnp.maximum(jnp.dot(x, w1, preferred_element_type=jnp.float32) + b1, 0.0)
    # TODO(synk): nn.Dropout(0.2) is only active in training; identity here (eval).
    h = jnp.maximum(jnp.dot(h, w2, preferred_element_type=jnp.float32) + b2, 0.0)
    pre = jnp.tanh(jnp.dot(h, w3, preferred_element_type=jnp.float32) + b3)

    # quantum circuit: RY(pre * pi) on |0...0> gives a real product state.
    # clip(tanh, -1, 1) is the identity; pi and the RY half-angle fold into pi/2.
    half = pre * (jnp.pi * 0.5)                        # (TB, 6)
    c = jnp.cos(half)
    s = jnp.sin(half)
    d = s - c

    bits = bits_ref[...]                               # (8, 64) host constant
    # per-qubit factor: c_i + bit * (s_i - c_i); qubit 0 also serves as the init.
    psi0 = c[:, 0:1] + bits[0:1, :] * d[:, 0:1]
    for i in range(1, N_QUBITS):                       # static unroll over qubits
        psi0 = psi0 * (c[:, i:i + 1] + bits[i:i + 1, :] * d[:, i:i + 1])

    # One lane-dense MXU matmul: R = [psi0 @ Re(U)^T | psi0 @ Im(U)^T] -> (TB, 128)
    r = jnp.dot(psi0, ucat_ref[...], preferred_element_type=jnp.float32)

    post = post_ref[...]                               # (post_rows, >=16)
    zw4 = post[0:2 * DIM, 0:16]
    b4 = post[r_b4:r_b4 + 1, 0:16]
    w5 = post[r_w5:r_w5 + 16, 0:out_w]
    b5 = post[r_b5:r_b5 + 1, 0:out_w]

    # Fused: (|Re|^2 + |Im|^2) @ zmat @ w4 + b4, ReLU, then final Linear.
    g = jnp.maximum(
        jnp.dot(r * r, zw4, preferred_element_type=jnp.float32) + b4, 0.0)
    out_ref[...] = jnp.dot(g, w5, preferred_element_type=jnp.float32) + b5


# ---------------------------------------------------------------------------
# Wrapper: generation-aware batch tiling + pallas_call.
# ---------------------------------------------------------------------------
def _num_tensorcores():
    # v7x has 2 TensorCores per chip (megacore); v5e/v6e have 1.
    try:
        kind = jax.devices()[0].device_kind.lower()
    except Exception:
        return 1
    return 2 if "v7" in kind else 1


def _pick_tiling(B, tb_max, n_cores):
    """Pick (TB, B_pad): TB always a multiple of 8; minimum number of grid
    steps (per-step overhead dominates on single-TC v5e/v6e), rounded up to a
    multiple of the TC count so v7x gets an even split; TB derived from the
    step count so tile padding waste stays below 8 rows per step."""
    B8 = _round_up(max(B, 1), 8)
    steps = max(1, pl.cdiv(B8, max(8, tb_max)))
    steps = _round_up(steps, max(1, n_cores))
    TB = _round_up(pl.cdiv(B8, steps), 8)
    B_pad = _round_up(B8, TB)
    return TB, B_pad


def quantum_cnn_forward(x, kparams, tb_max=2048):
    B, n_sym = x.shape
    meta = kparams["meta"]
    n_dep = meta["n_dep"]
    out_w = meta["out_w"]

    TB, B_pad = _pick_tiling(B, tb_max, _num_tensorcores())
    if B_pad != B:
        x = jnp.pad(x, ((0, B_pad - B), (0, 0)))

    kernel = functools.partial(quantum_cnn_kernel, n_sym=n_sym, out_w=out_w,
                               **meta["offsets"])

    consts = [kparams["pre_slab"], kparams["bits"], kparams["u_cat"],
              kparams["post_slab"]]

    def full_spec(a):
        return pl.BlockSpec(a.shape, lambda b: (0, 0))

    out_padded = pl.pallas_call(
        kernel,
        out_shape=jax.ShapeDtypeStruct((B_pad, out_w), jnp.float32),
        grid=(B_pad // TB,),
        in_specs=[pl.BlockSpec((TB, n_sym), lambda b: (b, 0))]
                 + [full_spec(a) for a in consts],
        out_specs=pl.BlockSpec((TB, out_w), lambda b: (b, 0)),
        compiler_params=pltpu.CompilerParams(
            dimension_semantics=("parallel",)),
    )(x, *consts)
    return out_padded[:B, :n_dep]


# ---------------------------------------------------------------------------
# Plain-JAX reference (un-fused math) for a correctness check.
# ---------------------------------------------------------------------------
def reference_forward(x, params):
    h = jnp.maximum(x @ params["w1"] + params["b1"], 0.0)
    h = jnp.maximum(h @ params["w2"] + params["b2"], 0.0)
    pre = jnp.tanh(h @ params["w3"] + params["b3"])
    theta = jnp.clip(pre, -1.0, 1.0) * jnp.pi
    c, s = jnp.cos(theta / 2), jnp.sin(theta / 2)
    idx = np.arange(DIM)
    psi0 = jnp.ones((x.shape[0], DIM), jnp.float32)
    for i in range(N_QUBITS):
        bit = (idx >> (N_QUBITS - 1 - i)) & 1
        psi0 = psi0 * jnp.where(bit[None, :] == 1, s[:, i:i + 1], c[:, i:i + 1])
    re = psi0 @ params["uret"]
    im = psi0 @ params["uimt"]
    probs = re * re + im * im
    q = probs @ params["zmat"]
    g = jnp.maximum(q @ params["w4"] + params["b4"], 0.0)
    return g @ params["w5"] + params["b5"]


if __name__ == "__main__":
    B = 16
    n_symptoms = 20
    n_departments = 10

    key = jax.random.PRNGKey(0)
    ks = jax.random.split(key, 12)

    # nn.Linear parameters, stored transposed (in, out); deterministic init.
    raw = {
        "w1": 0.1 * jax.random.normal(ks[0], (n_symptoms, 32), jnp.float32),
        "b1": 0.1 * jax.random.normal(ks[1], (1, 32), jnp.float32),
        "w2": 0.1 * jax.random.normal(ks[2], (32, 16), jnp.float32),
        "b2": 0.1 * jax.random.normal(ks[3], (1, 16), jnp.float32),
        "w3": 0.1 * jax.random.normal(ks[4], (16, N_QUBITS), jnp.float32),
        "b3": 0.1 * jax.random.normal(ks[5], (1, N_QUBITS), jnp.float32),
        "w4": 0.1 * jax.random.normal(ks[6], (N_QUBITS, 16), jnp.float32),
        "b4": 0.1 * jax.random.normal(ks[7], (1, 16), jnp.float32),
        "w5": 0.1 * jax.random.normal(ks[8], (16, n_departments), jnp.float32),
        "b5": 0.1 * jax.random.normal(ks[9], (1, n_departments), jnp.float32),
    }

    # q_weights = nn.Parameter(torch.randn(5, n_qubits)); fixed circuit unitary (glue).
    q_weights = np.asarray(jax.random.normal(ks[10], (5, N_QUBITS), jnp.float32),
                           dtype=np.float64)
    U = build_fixed_unitary(q_weights)
    raw["uret"] = jnp.asarray(U.real.T, jnp.float32)    # psi_row @ U^T
    raw["uimt"] = jnp.asarray(U.imag.T, jnp.float32)
    raw["zmat"] = jnp.asarray(build_pauliz_matrix())

    kparams = prepare_kernel_params(raw)

    x = jax.random.normal(ks[11], (B, n_symptoms), jnp.float32)

    out = quantum_cnn_forward(x, kparams)
    out = jax.block_until_ready(out)

    ref = jax.block_until_ready(reference_forward(x, raw))
    assert out.shape == (B, n_departments)
    assert np.allclose(np.asarray(out), np.asarray(ref), atol=1e-4, rtol=1e-4), (
        "Pallas kernel output mismatch vs reference")

    print("KERNEL_OK")
</pallas_src>

<mosaic_0001>
module attributes {stable_mosaic.version = 11 : i64} {
  func.func @quantum_cnn_kernel(%arg0: i32, %arg1: memref<16x20xf32, #tpu.memory_space<vmem>>, %arg2: memref<96x32xf32, #tpu.memory_space<vmem>>, %arg3: memref<8x64xf32, #tpu.memory_space<vmem>>, %arg4: memref<64x128xf32, #tpu.memory_space<vmem>>, %arg5: memref<160x16xf32, #tpu.memory_space<vmem>>, %arg6: memref<16x16xf32, #tpu.memory_space<vmem>>) attributes {dimension_semantics = [#tpu.dimension_semantics<parallel>], iteration_bounds = array<i64: 1>, scalar_prefetch = 0 : i64, scratch_operands = 0 : i64, tpu.core_type = #tpu.core_type<tc>, window_params = [{transform_indices = @transform_0, window_bounds = array<i64: 16, 20>}, {pipeline_mode = #tpu.pipeline_mode<synchronous>, transform_indices = @transform_1, window_bounds = array<i64: 96, 32>}, {pipeline_mode = #tpu.pipeline_mode<synchronous>, transform_indices = @transform_2, window_bounds = array<i64: 8, 64>}, {pipeline_mode = #tpu.pipeline_mode<synchronous>, transform_indices = @transform_3, window_bounds = array<i64: 64, 128>}, {pipeline_mode = #tpu.pipeline_mode<synchronous>, transform_indices = @transform_4, window_bounds = array<i64: 160, 16>}, {transform_indices = @transform_5, window_bounds = array<i64: 16, 16>}]} {
    %c0 = arith.constant 0 : index
    %c0_0 = arith.constant 0 : index
    %0 = vector.load %arg1[%c0, %c0_0] : memref<16x20xf32, #tpu.memory_space<vmem>>, vector<16x20xf32>
    %c0_1 = arith.constant 0 : index
    %c0_2 = arith.constant 0 : index
    %1 = vector.load %arg2[%c0_1, %c0_2] : memref<96x32xf32, #tpu.memory_space<vmem>>, vector<96x32xf32>
    %2 = vector.extract_strided_slice %1 {offsets = [0, 0], sizes = [20, 32], strides = [1, 1]} : vector<96x32xf32> to vector<20x32xf32>
    %3 = vector.extract_strided_slice %1 {offsets = [24, 0], sizes = [1, 32], strides = [1, 1]} : vector<96x32xf32> to vector<1x32xf32>
    %4 = vector.extract_strided_slice %1 {offsets = [32, 0], sizes = [32, 16], strides = [1, 1]} : vector<96x32xf32> to vector<32x16xf32>
    %5 = vector.extract_strided_slice %1 {offsets = [64, 0], sizes = [1, 16], strides = [1, 1]} : vector<96x32xf32> to vector<1x16xf32>
    %6 = vector.extract_strided_slice %1 {offsets = [72, 0], sizes = [16, 6], strides = [1, 1]} : vector<96x32xf32> to vector<16x6xf32>
    %7 = vector.extract_strided_slice %1 {offsets = [88, 0], sizes = [1, 6], strides = [1, 1]} : vector<96x32xf32> to vector<1x6xf32>
    %cst = arith.constant dense<0.000000e+00> : vector<16x32xf32>
    %8 = tpu.matmul %0, %2, %cst {dimension_numbers = #tpu.dot_dimension_numbers<[1], [0], [0], [1], [0, 0, 1, 1], [], []>} : vector<16x20xf32>, vector<20x32xf32>, vector<16x32xf32> -> vector<16x32xf32>
    %9 = vector.broadcast %3 : vector<1x32xf32> to vector<16x32xf32>
    %10 = arith.addf %8, %9 : vector<16x32xf32>
    %cst_3 = arith.constant 0.000000e+00 : f32
    %11 = vector.broadcast %cst_3 : f32 to vector<16x32xf32>
    %12 = arith.maximumf %10, %11 : vector<16x32xf32>
    %cst_4 = arith.constant dense<0.000000e+00> : vector<16x16xf32>
    %13 = tpu.matmul %12, %4, %cst_4 {dimension_numbers = #tpu.dot_dimension_numbers<[1], [0], [0], [1], [0, 0, 1, 1], [], []>} : vector<16x32xf32>, vector<32x16xf32>, vector<16x16xf32> -> vector<16x16xf32>
    %14 = vector.broadcast %5 : vector<1x16xf32> to vector<16x16xf32>
    %15 = arith.addf %13, %14 : vector<16x16xf32>
    %cst_5 = arith.constant 0.000000e+00 : f32
    %16 = vector.broadcast %cst_5 : f32 to vector<16x16xf32>
    %17 = arith.maximumf %15, %16 : vector<16x16xf32>
    %cst_6 = arith.constant dense<0.000000e+00> : vector<16x6xf32>
    %18 = tpu.matmul %17, %6, %cst_6 {dimension_numbers = #tpu.dot_dimension_numbers<[1], [0], [0], [1], [0, 0, 1, 1], [], []>} : vector<16x16xf32>, vector<16x6xf32>, vector<16x6xf32> -> vector<16x6xf32>
    %19 = vector.broadcast %7 : vector<1x6xf32> to vector<16x6xf32>
    %20 = arith.addf %18, %19 : vector<16x6xf32>
    %21 = math.tanh %20 : vector<16x6xf32>
    %cst_7 = arith.constant 1.57079637 : f32
    %22 = vector.broadcast %cst_7 : f32 to vector<16x6xf32>
    %23 = arith.mulf %21, %22 : vector<16x6xf32>
    %24 = math.cos %23 : vector<16x6xf32>
    %25 = math.sin %23 : vector<16x6xf32>
    %26 = arith.subf %25, %24 : vector<16x6xf32>
    %c0_8 = arith.constant 0 : index
    %c0_9 = arith.constant 0 : index
    %27 = vector.load %arg3[%c0_8, %c0_9] : memref<8x64xf32, #tpu.memory_space<vmem>>, vector<8x64xf32>
    %28 = vector.extract_strided_slice %24 {offsets = [0, 0], sizes = [16, 1], strides = [1, 1]} : vector<16x6xf32> to vector<16x1xf32>
    %29 = vector.extract_strided_slice %27 {offsets = [0, 0], sizes = [1, 64], strides = [1, 1]} : vector<8x64xf32> to vector<1x64xf32>
    %30 = vector.extract_strided_slice %26 {offsets = [0, 0], sizes = [16, 1], strides = [1, 1]} : vector<16x6xf32> to vector<16x1xf32>
    %31 = vector.broadcast %29 : vector<1x64xf32> to vector<16x64xf32>
    %32 = vector.broadcast %30 : vector<16x1xf32> to vector<16x64xf32>
    %33 = arith.mulf %31, %32 : vector<16x64xf32>
    %34 = vector.broadcast %28 : vector<16x1xf32> to vector<16x64xf32>
    %35 = arith.addf %34, %33 : vector<16x64xf32>
    %36 = vector.extract_strided_slice %24 {offsets = [0, 1], sizes = [16, 1], strides = [1, 1]} : vector<16x6xf32> to vector<16x1xf32>
    %37 = vector.extract_strided_slice %27 {offsets = [1, 0], sizes = [1, 64], strides = [1, 1]} : vector<8x64xf32> to vector<1x64xf32>
    %38 = vector.extract_strided_slice %26 {offsets = [0, 1], sizes = [16, 1], strides = [1, 1]} : vector<16x6xf32> to vector<16x1xf32>
    %39 = vector.broadcast %37 : vector<1x64xf32> to vector<16x64xf32>
    %40 = vector.broadcast %38 : vector<16x1xf32> to vector<16x64xf32>
    %41 = arith.mulf %39, %40 : vector<16x64xf32>
    %42 = vector.broadcast %36 : vector<16x1xf32> to vector<16x64xf32>
    %43 = arith.addf %42, %41 : vector<16x64xf32>
    %44 = arith.mulf %35, %43 : vector<16x64xf32>
    %45 = vector.extract_strided_slice %24 {offsets = [0, 2], sizes = [16, 1], strides = [1, 1]} : vector<16x6xf32> to vector<16x1xf32>
    %46 = vector.extract_strided_slice %27 {offsets = [2, 0], sizes = [1, 64], strides = [1, 1]} : vector<8x64xf32> to vector<1x64xf32>
    %47 = vector.extract_strided_slice %26 {offsets = [0, 2], sizes = [16, 1], strides = [1, 1]} : vector<16x6xf32> to vector<16x1xf32>
    %48 = vector.broadcast %46 : vector<1x64xf32> to vector<16x64xf32>
    %49 = vector.broadcast %47 : vector<16x1xf32> to vector<16x64xf32>
    %50 = arith.mulf %48, %49 : vector<16x64xf32>
    %51 = vector.broadcast %45 : vector<16x1xf32> to vector<16x64xf32>
    %52 = arith.addf %51, %50 : vector<16x64xf32>
    %53 = arith.mulf %44, %52 : vector<16x64xf32>
    %54 = vector.extract_strided_slice %24 {offsets = [0, 3], sizes = [16, 1], strides = [1, 1]} : vector<16x6xf32> to vector<16x1xf32>
    %55 = vector.extract_strided_slice %27 {offsets = [3, 0], sizes = [1, 64], strides = [1, 1]} : vector<8x64xf32> to vector<1x64xf32>
    %56 = vector.extract_strided_slice %26 {offsets = [0, 3], sizes = [16, 1], strides = [1, 1]} : vector<16x6xf32> to vector<16x1xf32>
    %57 = vector.broadcast %55 : vector<1x64xf32> to vector<16x64xf32>
    %58 = vector.broadcast %56 : vector<16x1xf32> to vector<16x64xf32>
    %59 = arith.mulf %57, %58 : vector<16x64xf32>
    %60 = vector.broadcast %54 : vector<16x1xf32> to vector<16x64xf32>
    %61 = arith.addf %60, %59 : vector<16x64xf32>
    %62 = arith.mulf %53, %61 : vector<16x64xf32>
    %63 = vector.extract_strided_slice %24 {offsets = [0, 4], sizes = [16, 1], strides = [1, 1]} : vector<16x6xf32> to vector<16x1xf32>
    %64 = vector.extract_strided_slice %27 {offsets = [4, 0], sizes = [1, 64], strides = [1, 1]} : vector<8x64xf32> to vector<1x64xf32>
    %65 = vector.extract_strided_slice %26 {offsets = [0, 4], sizes = [16, 1], strides = [1, 1]} : vector<16x6xf32> to vector<16x1xf32>
    %66 = vector.broadcast %64 : vector<1x64xf32> to vector<16x64xf32>
    %67 = vector.broadcast %65 : vector<16x1xf32> to vector<16x64xf32>
    %68 = arith.mulf %66, %67 : vector<16x64xf32>
    %69 = vector.broadcast %63 : vector<16x1xf32> to vector<16x64xf32>
    %70 = arith.addf %69, %68 : vector<16x64xf32>
    %71 = arith.mulf %62, %70 : vector<16x64xf32>
    %72 = vector.extract_strided_slice %24 {offsets = [0, 5], sizes = [16, 1], strides = [1, 1]} : vector<16x6xf32> to vector<16x1xf32>
    %73 = vector.extract_strided_slice %27 {offsets = [5, 0], sizes = [1, 64], strides = [1, 1]} : vector<8x64xf32> to vector<1x64xf32>
    %74 = vector.extract_strided_slice %26 {offsets = [0, 5], sizes = [16, 1], strides = [1, 1]} : vector<16x6xf32> to vector<16x1xf32>
    %75 = vector.broadcast %73 : vector<1x64xf32> to vector<16x64xf32>
    %76 = vector.broadcast %74 : vector<16x1xf32> to vector<16x64xf32>
    %77 = arith.mulf %75, %76 : vector<16x64xf32>
    %78 = vector.broadcast %72 : vector<16x1xf32> to vector<16x64xf32>
    %79 = arith.addf %78, %77 : vector<16x64xf32>
    %80 = arith.mulf %71, %79 : vector<16x64xf32>
    %c0_10 = arith.constant 0 : index
    %c0_11 = arith.constant 0 : index
    %81 = vector.load %arg4[%c0_10, %c0_11] : memref<64x128xf32, #tpu.memory_space<vmem>>, vector<64x128xf32>
    %cst_12 = arith.constant dense<0.000000e+00> : vector<16x128xf32>
    %82 = tpu.matmul %80, %81, %cst_12 {dimension_numbers = #tpu.dot_dimension_numbers<[1], [0], [0], [1], [0, 0, 1, 1], [], []>} : vector<16x64xf32>, vector<64x128xf32>, vector<16x128xf32> -> vector<16x128xf32>
    %c0_13 = arith.constant 0 : index
    %c0_14 = arith.constant 0 : index
    %83 = vector.load %arg5[%c0_13, %c0_14] : memref<160x16xf32, #tpu.memory_space<vmem>>, vector<160x16xf32>
    %84 = vector.extract_strided_slice %83 {offsets = [0, 0], sizes = [128, 16], strides = [1, 1]} : vector<160x16xf32> to vector<128x16xf32>
    %85 = vector.extract_strided_slice %83 {offsets = [128, 0], sizes = [1, 16], strides = [1, 1]} : vector<160x16xf32> to vector<1x16xf32>
    %86 = vector.extract_strided_slice %83 {offsets = [136, 0], sizes = [16, 16], strides = [1, 1]} : vector<160x16xf32> to vector<16x16xf32>
    %87 = vector.extract_strided_slice %83 {offsets = [152, 0], sizes = [1, 16], strides = [1, 1]} : vector<160x16xf32> to vector<1x16xf32>
    %88 = arith.mulf %82, %82 : vector<16x128xf32>
    %cst_15 = arith.constant dense<0.000000e+00> : vector<16x16xf32>
    %89 = tpu.matmul %88, %84, %cst_15 {dimension_numbers = #tpu.dot_dimension_numbers<[1], [0], [0], [1], [0, 0, 1, 1], [], []>} : vector<16x128xf32>, vector<128x16xf32>, vector<16x16xf32> -> vector<16x16xf32>
    %90 = vector.broadcast %85 : vector<1x16xf32> to vector<16x16xf32>
    %91 = arith.addf %89, %90 : vector<16x16xf32>
    %cst_16 = arith.constant 0.000000e+00 : f32
    %92 = vector.broadcast %cst_16 : f32 to vector<16x16xf32>
    %93 = arith.maximumf %91, %92 : vector<16x16xf32>
    %cst_17 = arith.constant dense<0.000000e+00> : vector<16x16xf32>
    %94 = tpu.matmul %93, %86, %cst_17 {dimension_numbers = #tpu.dot_dimension_numbers<[1], [0], [0], [1], [0, 0, 1, 1], [], []>} : vector<16x16xf32>, vector<16x16xf32>, vector<16x16xf32> -> vector<16x16xf32>
    %95 = vector.broadcast %87 : vector<1x16xf32> to vector<16x16xf32>
    %96 = arith.addf %94, %95 : vector<16x16xf32>
    %c0_18 = arith.constant 0 : index
    %c0_19 = arith.constant 0 : index
    %97 = vector.load %arg6[%c0_18, %c0_19] : memref<16x16xf32, #tpu.memory_space<vmem>>, vector<16x16xf32>
    tpu.vector_store %arg6[%c0_18, %c0_19], %96 {strides = array<i32>} : memref<16x16xf32, #tpu.memory_space<vmem>>, vector<16x16xf32>,
    return
  }
  func.func @transform_0(%arg0: i32) -> (i32, i32) {
    %c0_i32 = arith.constant 0 : i32
    %c0_i32_0 = arith.constant 0 : i32
    return %arg0, %c0_i32 : i32, i32
  }
  func.func @transform_1(%arg0: i32) -> (i32, i32) {
    %c0_i32 = arith.constant 0 : i32
    %c0_i32_0 = arith.constant 0 : i32
    %c0_i32_1 = arith.constant 0 : i32
    return %c0_i32, %c0_i32_0 : i32, i32
  }
  func.func @transform_2(%arg0: i32) -> (i32, i32) {
    %c0_i32 = arith.constant 0 : i32
    %c0_i32_0 = arith.constant 0 : i32
    %c0_i32_1 = arith.constant 0 : i32
    return %c0_i32, %c0_i32_0 : i32, i32
  }
  func.func @transform_3(%arg0: i32) -> (i32, i32) {
    %c0_i32 = arith.constant 0 : i32
    %c0_i32_0 = arith.constant 0 : i32
    %c0_i32_1 = arith.constant 0 : i32
    return %c0_i32, %c0_i32_0 : i32, i32
  }
  func.func @transform_4(%arg0: i32) -> (i32, i32) {
    %c0_i32 = arith.constant 0 : i32
    %c0_i32_0 = arith.constant 0 : i32
    %c0_i32_1 = arith.constant 0 : i32
    return %c0_i32, %c0_i32_0 : i32, i32
  }
  func.func @transform_5(%arg0: i32) -> (i32, i32) {
    %c0_i32 = arith.constant 0 : i32
    %c0_i32_0 = arith.constant 0 : i32
    return %arg0, %c0_i32 : i32, i32
  }
}

</mosaic_0001>

<llo_original>
// kernel: tpu_custom_call.1
$region0: #{tpu_custom_call.1}
  #allocation0 [shape = 'u32[]', space=smem, size = 0x4, offset = 0x4, fixed_abs, tag = 'smem constant byte address 0x4 - core index']
  #allocation1 [shape = 'u32[144,128]{1,0:T(1,128)}', space=vmem, size = 0x12000, scoped, tag = 'internal scratch']
  %s0 = inlined_call_operand.vmem [shape: f32[16,20], index: 0, kind: input, shape index: {}]
  %s1 = inlined_call_operand.vmem [shape: f32[96,32], index: 1, kind: input, shape index: {}]
  %s2 = inlined_call_operand.vmem [shape: f32[8,64], index: 2, kind: input, shape index: {}]
  %s3 = inlined_call_operand.vmem [shape: f32[64,128], index: 3, kind: input, shape index: {}]
  %s4 = inlined_call_operand.vmem [shape: f32[160,16], index: 4, kind: input, shape index: {}]
  %s5 = inlined_call_operand.hbm [shape: f32[16,16], index: 5, kind: output, shape index: {}]
  %s6 = sld [smem:[#allocation0]]
  $region30: #{tpu_custom_call.1} parent=0
    _
  %s8 = ssub.s32 1, %s6
  %s9 = scalar_select 0, %s8, %s6
  $region1: #{tpu_custom_call.1} parent=0
    #allocation2 [shape = 'u8[8192]{0}', space=vmem, size = 0x2000, scoped, tag = 'output window, operand 0, single buffered']
    #allocation3 [shape = 's32[1]{0}', space=sflag, size = 0x4, scoped, tag = 'scoped memory for tpu_custom_call.1']
    %10 = vsyncpa [#allocation3], 0
    // Predicated region
    $region2: #{tpu_custom_call.1} parent=1 // pred_check
      _
    $region3: #{tpu_custom_call.1} parent=1 // pred_check_branch
      %12 = sbr.rel (0) target = $region5
    $region4: #{tpu_custom_call.1} parent=1 // pred_region
      _
    $region5: #{tpu_custom_call.1} parent=1 // pred_fallthru
      _
    // Predicated region
    $region6: #{tpu_custom_call.1} parent=1 // pred_check
      _
    $region7: #{tpu_custom_call.1} parent=1 // pred_check_branch
      %14 = sbr.rel (0) target = $region9
    $region8: #{tpu_custom_call.1} parent=1 // pred_region
      _
    $region9: #{tpu_custom_call.1} parent=1 // pred_fallthru
      _
    // Predicated region
    $region10: #{tpu_custom_call.1} parent=1 // pred_check
      _
    $region11: #{tpu_custom_call.1} parent=1 // pred_check_branch
      %16 = sbr.rel (0) target = $region13
    $region12: #{tpu_custom_call.1} parent=1 // pred_region
      _
    $region13: #{tpu_custom_call.1} parent=1 // pred_fallthru
      _
    // Predicated region
    $region14: #{tpu_custom_call.1} parent=1 // pred_check
      _
    $region15: #{tpu_custom_call.1} parent=1 // pred_check_branch
      %18 = sbr.rel (0) target = $region17
    $region16: #{tpu_custom_call.1} parent=1 // pred_region
      _
    $region17: #{tpu_custom_call.1} parent=1 // pred_fallthru
      _
    // Predicated region
    $region18: #{tpu_custom_call.1} parent=1 // pred_check
      _
    $region19: #{tpu_custom_call.1} parent=1 // pred_check_branch
      %20 = sbr.rel (0) target = $region21
    $region20: #{tpu_custom_call.1} parent=1 // pred_region
      _
    $region21: #{tpu_custom_call.1} parent=1 // pred_fallthru
      _
    %v21 = vld [vmem:[%s0] sm:$0xff]
    %v22 = vld [vmem:[%s0 + $0x8] sm:$0xff]
    %v23 = vld [vmem:[%s1] sm:$0xff]
    %v24 = vld [vmem:[%s1 + $0x8] sm:$0xff]
    %v25 = vld [vmem:[%s1 + $0x10] sm:$0xff]
    %v26 = vld [vmem:[%s1 + $0x18] sm:$0xff]
    %v27 = vld [vmem:[%s1 + $0x20] sm:$0xff]
    %v28 = vld [vmem:[%s1 + $0x28] sm:$0xff]
    %v29 = vld [vmem:[%s1 + $0x30] sm:$0xff]
    %v30 = vld [vmem:[%s1 + $0x38] sm:$0xff]
    %v31 = vld [vmem:[%s1 + $0x40] sm:$0xff]
    %v32 = vld [vmem:[%s1 + $0x48] sm:$0xff]
    %v33 = vld [vmem:[%s1 + $0x50] sm:$0xff]
    %v34 = vld [vmem:[%s1 + $0x58] sm:$0xff]
    %v35 = vlaneseq
    %v36 = vshrl.u32 %v35, 7
    %v37 = vsub.s32 0, %v36
    %v38 = vrot.slane %v26, %v37
    %vm39 = vcmask 162816
    %v41 = vsel %vm39, %v21, 0
    %v44 = vsel %vm39, %v22, 0
    %vm46 = vcmask 1043456
    %v48 = vsel %vm46, %v25, 0
    %50 = vmatprep.subr.mxu0 0.0
    %51 = vmatpush1.msra.mxu0 %v23
    %52 = vmatprep.subr.mxu0 0.0
    %53 = vmatpush1.msra.mxu0 %v24
    %54 = vmatprep.subr.mxu0 0.0
    %55 = vmatpush1.msra.mxu0 %v48
    %56 = vmatprep.subr.mxu0 0.0
    %57 = vmatpush1.msra.mxu0 0.0
    %58 = vmatprep.subr.mxu0 0.0
    %59 = vmatpush1.msra.mxu0 0.0
    %60 = vmatprep.subr.mxu0 0.0
    %61 = vmatpush1.msra.mxu0 0.0
    %62 = vmatprep.subr.mxu0 0.0
    %63 = vmatpush1.msra.mxu0 0.0
    %64 = vmatprep.subr.mxu0 0.0
    %65 = vmatpush1.msra.mxu0 0.0
    %66 = vmatprep.subr.mxu0 0.0
    %67 = vmatpush1.msra.mxu0 0.0
    %68 = vmatprep.subr.mxu0 0.0
    %69 = vmatpush1.msra.mxu0 0.0
    %70 = vmatprep.subr.mxu0 0.0
    %71 = vmatpush1.msra.mxu0 0.0
    %72 = vmatprep.subr.mxu0 0.0
    %73 = vmatpush1.msra.mxu0 0.0
    %74 = vmatprep.subr.mxu0 0.0
    %75 = vmatpush1.msra.mxu0 0.0
    %76 = vmatprep.subr.mxu0 0.0
    %77 = vmatpush1.msra.mxu0 0.0
    %78 = vmatprep.subr.mxu0 0.0
    %79 = vmatpush1.msra.mxu0 0.0
    %80 = vmatprep.subr.mxu0 0.0
    %81 = vmatpush1.msra.mxu0 0.0
    %82 = vmatprep.subr.mxu0 0.0
    %83 = vmatpush1.msra.mxu0 0.0
    %84 = vmatprep.subr.mxu0 0.0
    %85 = vmatpush1.msra.mxu0 0.0
    %86 = vmatprep.subr.mxu0 0.0
    %87 = vmatpush1.msra.mxu0 0.0
    %88 = vmatprep.subr.mxu0 0.0
    %89 = vmatpush1.msra.mxu0 0.0
    %90 = vmatprep.subr.mxu0 0.0
    %91 = vmatpush1.msra.mxu0 0.0
    %92 = vmatprep.subr.mxu0 0.0
    %93 = vmatpush1.msra.mxu0 0.0
    %94 = vmatprep.subr.mxu0 0.0
    %95 = vmatpush1.msra.mxu0 0.0
    %96 = vmatprep.subr.mxu0 0.0
    %97 = vmatpush1.msra.mxu0 0.0
    %98 = vmatprep.subr.mxu0 0.0
    %99 = vmatpush1.msra.mxu0 0.0
    %100 = vmatprep.subr.mxu0 0.0
    %101 = vmatpush1.msra.mxu0 0.0
    %102 = vmatprep.subr.mxu0 0.0
    %103 = vmatpush1.msra.mxu0 0.0
    %104 = vmatprep.subr.mxu0 0.0
    %105 = vmatpush1.msra.mxu0 0.0
    %106 = vmatprep.subr.mxu0 0.0
    %107 = vmatpush1.msra.mxu0 0.0
    %108 = vmatprep.subr.mxu0 0.0
    %109 = vmatpush1.msra.mxu0 0.0
    %110 = vmatprep.subr.mxu0 0.0
    %111 = vmatpush1.msra.mxu0 0.0
    %112 = vmatprep.subr.mxu0 0.0
    %113 = vmatpush1.msra.mxu0 0.0
    %114 = vmatprep.mubr.f32.mxu0 0.0
    %115 = vmatmul.mubr.f32.gmra.mrb[0].mxu0 %v41
    %v116 = vpop.f32.mrb[0].mxu0
    %v117 = vadd.f32 %v38, %v116
    %v118 = vpop.f32.mrb[0].mxu0
    %119 = vmatprep.mubr.f32.mxu0 0.0
    %120 = vmatmul.mubr.f32.gmra.mrb[0].mxu0 %v44
    %v121 = vpop.f32.mrb[0].mxu0
    %v122 = vadd.f32 %v38, %v121
    %v123 = vpop.f32.mrb[0].mxu0
    %124 = vdwg.mxu0
    %v125 = vmax.f32 %v117, 0.0
    %v126 = vmax.f32 %v122, 0.0
    %v127 = vlaneseq
    %v128 = vshrl.u32 %v127, 7
    %v129 = vsub.s32 0, %v128
    %v130 = vrot.slane %v31, %v129
    %vm131 = vcmask 261120
    %v133 = vsel %vm131, %v125, 0
    %v136 = vsel %vm131, %v126, 0
    %138 = vmatprep.subr.mxu0 0.0
    %139 = vmatpush1.msra.mxu0 %v27
    %140 = vmatprep.subr.mxu0 0.0
    %141 = vmatpush1.msra.mxu0 %v28
    %142 = vmatprep.subr.mxu0 0.0
    %143 = vmatpush1.msra.mxu0 %v29
    %144 = vmatprep.subr.mxu0 0.0
    %145 = vmatpush1.msra.mxu0 %v30
    %146 = vmatprep.subr.mxu0 0.0
    %147 = vmatpush1.msra.mxu0 0.0
    %148 = vmatprep.subr.mxu0 0.0
    %149 = vmatpush1.msra.mxu0 0.0
    %150 = vmatprep.subr.mxu0 0.0
    %151 = vmatpush1.msra.mxu0 0.0
    %152 = vmatprep.subr.mxu0 0.0
    %153 = vmatpush1.msra.mxu0 0.0
    %154 = vmatprep.subr.mxu0 0.0
    %155 = vmatpush1.msra.mxu0 0.0
    %156 = vmatprep.subr.mxu0 0.0
    %157 = vmatpush1.msra.mxu0 0.0
    %158 = vmatprep.subr.mxu0 0.0
    %159 = vmatpush1.msra.mxu0 0.0
    %160 = vmatprep.subr.mxu0 0.0
    %161 = vmatpush1.msra.mxu0 0.0
    %162 = vmatprep.subr.mxu0 0.0
    %163 = vmatpush1.msra.mxu0 0.0
    %164 = vmatprep.subr.mxu0 0.0
    %165 = vmatpush1.msra.mxu0 0.0
    %166 = vmatprep.subr.mxu0 0.0
    %167 = vmatpush1.msra.mxu0 0.0
    %168 = vmatprep.subr.mxu0 0.0
    %169 = vmatpush1.msra.mxu0 0.0
    %170 = vmatprep.subr.mxu0 0.0
    %171 = vmatpush1.msra.mxu0 0.0
    %172 = vmatprep.subr.mxu0 0.0
    %173 = vmatpush1.msra.mxu0 0.0
    %174 = vmatprep.subr.mxu0 0.0
    %175 = vmatpush1.msra.mxu0 0.0
    %176 = vmatprep.subr.mxu0 0.0
    %177 = vmatpush1.msra.mxu0 0.0
    %178 = vmatprep.subr.mxu0 0.0
    %179 = vmatpush1.msra.mxu0 0.0
    %180 = vmatprep.subr.mxu0 0.0
    %181 = vmatpush1.msra.mxu0 0.0
    %182 = vmatprep.subr.mxu0 0.0
    %183 = vmatpush1.msra.mxu0 0.0
    %184 = vmatprep.subr.mxu0 0.0
    %185 = vmatpush1.msra.mxu0 0.0
    %186 = vmatprep.subr.mxu0 0.0
    %187 = vmatpush1.msra.mxu0 0.0
    %188 = vmatprep.subr.mxu0 0.0
    %189 = vmatpush1.msra.mxu0 0.0
    %190 = vmatprep.subr.mxu0 0.0
    %191 = vmatpush1.msra.mxu0 0.0
    %192 = vmatprep.subr.mxu0 0.0
    %193 = vmatpush1.msra.mxu0 0.0
    %194 = vmatprep.subr.mxu0 0.0
    %195 = vmatpush1.msra.mxu0 0.0
    %196 = vmatprep.subr.mxu0 0.0
    %197 = vmatpush1.msra.mxu0 0.0
    %198 = vmatprep.subr.mxu0 0.0
    %199 = vmatpush1.msra.mxu0 0.0
    %200 = vmatprep.subr.mxu0 0.0
    %201 = vmatpush1.msra.mxu0 0.0
    %202 = vmatprep.mubr.f32.mxu0 0.0
    %203 = vmatmul.mubr.f32.gmra.mrb[0].mxu0 %v133
    %v204 = vpop.f32.mrb[0].mxu0
    %v205 = vadd.f32 %v130, %v204
    %v206 = vpop.f32.mrb[0].mxu0
    %207 = vmatprep.mubr.f32.mxu0 0.0
    %208 = vmatmul.mubr.f32.gmra.mrb[0].mxu0 %v136
    %v209 = vpop.f32.mrb[0].mxu0
    %v210 = vadd.f32 %v130, %v209
    %v211 = vpop.f32.mrb[0].mxu0
    %212 = vdwg.mxu0
    %v213 = vmax.f32 %v205, 0.0
    %v214 = vmax.f32 %v210, 0.0
    %v215 = vlaneseq
    %v216 = vshrl.u32 %v215, 7
    %v217 = vsub.s32 0, %v216
    %v218 = vrot.slane %v34, %v217
    %vm219 = vcmask 130048
    %v221 = vsel %vm219, %v213, 0
    %v224 = vsel %vm219, %v214, 0
    %226 = vmatprep.subr.mxu0 0.0
    %227 = vmatpush1.msra.mxu0 %v32
    %228 = vmatprep.subr.mxu0 0.0
    %229 = vmatpush1.msra.mxu0 %v33
    %230 = vmatprep.subr.mxu0 0.0
    %231 = vmatpush1.msra.mxu0 0.0
    %232 = vmatprep.subr.mxu0 0.0
    %233 = vmatpush1.msra.mxu0 0.0
    %234 = vmatprep.subr.mxu0 0.0
    %235 = vmatpush1.msra.mxu0 0.0
    %236 = vmatprep.subr.mxu0 0.0
    %237 = vmatpush1.msra.mxu0 0.0
    %238 = vmatprep.subr.mxu0 0.0
    %239 = vmatpush1.msra.mxu0 0.0
    %240 = vmatprep.subr.mxu0 0.0
    %241 = vmatpush1.msra.mxu0 0.0
    %242 = vmatprep.subr.mxu0 0.0
    %243 = vmatpush1.msra.mxu0 0.0
    %244 = vmatprep.subr.mxu0 0.0
    %245 = vmatpush1.msra.mxu0 0.0
    %246 = vmatprep.subr.mxu0 0.0
    %247 = vmatpush1.msra.mxu0 0.0
    %248 = vmatprep.subr.mxu0 0.0
    %249 = vmatpush1.msra.mxu0 0.0
    %250 = vmatprep.subr.mxu0 0.0
    %251 = vmatpush1.msra.mxu0 0.0
    %252 = vmatprep.subr.mxu0 0.0
    %253 = vmatpush1.msra.mxu0 0.0
    %254 = vmatprep.subr.mxu0 0.0
    %255 = vmatpush1.msra.mxu0 0.0
    %256 = vmatprep.subr.mxu0 0.0
    %257 = vmatpush1.msra.mxu0 0.0
    %258 = vmatprep.subr.mxu0 0.0
    %259 = vmatpush1.msra.mxu0 0.0
    %260 = vmatprep.subr.mxu0 0.0
    %261 = vmatpush1.msra.mxu0 0.0
    %262 = vmatprep.subr.mxu0 0.0
    %263 = vmatpush1.msra.mxu0 0.0
    %264 = vmatprep.subr.mxu0 0.0
    %265 = vmatpush1.msra.mxu0 0.0
    %266 = vmatprep.subr.mxu0 0.0
    %267 = vmatpush1.msra.mxu0 0.0
    %268 = vmatprep.subr.mxu0 0.0
    %269 = vmatpush1.msra.mxu0 0.0
    %270 = vmatprep.subr.mxu0 0.0
    %271 = vmatpush1.msra.mxu0 0.0
    %272 = vmatprep.subr.mxu0 0.0
    %273 = vmatpush1.msra.mxu0 0.0
    %274 = vmatprep.subr.mxu0 0.0
    %275 = vmatpush1.msra.mxu0 0.0
    %276 = vmatprep.subr.mxu0 0.0
    %277 = vmatpush1.msra.mxu0 0.0
    %278 = vmatprep.subr.mxu0 0.0
    %279 = vmatpush1.msra.mxu0 0.0
    %280 = vmatprep.subr.mxu0 0.0
    %281 = vmatpush1.msra.mxu0 0.0
    %282 = vmatprep.subr.mxu0 0.0
    %283 = vmatpush1.msra.mxu0 0.0
    %284 = vmatprep.subr.mxu0 0.0
    %285 = vmatpush1.msra.mxu0 0.0
    %286 = vmatprep.subr.mxu0 0.0
    %287 = vmatpush1.msra.mxu0 0.0
    %288 = vmatprep.subr.mxu0 0.0
    %289 = vmatpush1.msra.mxu0 0.0
    %290 = vmatprep.mubr.f32.mxu0 0.0
    %291 = vmatmul.mubr.f32.gmra.mrb[0].mxu0 %v221
    %v292 = vpop.f32.mrb[0].mxu0
    %v293 = vadd.f32 %v218, %v292
    %v294 = vpop.f32.mrb[0].mxu0
    %295 = vmatprep.mubr.f32.mxu0 0.0
    %296 = vmatmul.mubr.f32.gmra.mrb[0].mxu0 %v224
    %v297 = vpop.f32.mrb[0].mxu0
    %v298 = vadd.f32 %v218, %v297
    %v299 = vpop.f32.mrb[0].mxu0
    %300 = vdwg.mxu0
    %v301 = vtanh.pop %v293
    %v302 = vtanh.pop %v298
    %v303 = vmul.f32 %v301, 1.5707964
    %v304 = vmul.f32 %v302, 1.5707964
    %v305 = vand.u32 2147483647, %v303
    %vm306 = vcmp.le.f32.partialorder %v305, 0.7853982
    %vm307 = vcmp.lt.s32.totalorder %v303, 0
    %v308 = vand.u32 %v303, 2139095040
    %v309 = vshrl.u32 %v308, 23
    %v310 = vsub.s32 %v309, 127
    %v311 = vand.u32 2147483647, %v303
    %v312 = vand.u32 %v311, 8388607
    %v313 = vor.u32 %v312, 8388608
    %v314 = vsub.s32 0, %v313
    %v315 = vadd.s32 %v310, 1
    %vm316 = vcmp.gt.s32.totalorder %v315, 0
    %v317 = vsel %vm316, %v315, 0
    %v318 = vshrl.u32 %v317, 5
    %v319 = vand.u32 %v317, 31
    %v320 = vsub.s32 32, %v319
    %v321 = vshrl.u32 683565275, %v320
    %v322 = vshll.u32 683565275, %v319
    %v323 = vshrl.u32 2475754826, %v320
    %v324 = vor.u32 %v322, %v323
    %v325 = vshll.u32 2475754826, %v319
    %v326 = vshrl.u32 2131351028, %v320
    %v327 = vor.u32 %v325, %v326
    %v328 = vshll.u32 2131351028, %v319
    %v329 = vshrl.u32 2102212464, %v320
    %v330 = vor.u32 %v328, %v329
    %v331 = vshll.u32 2102212464, %v319
    %v332 = vshrl.u32 920167782, %v320
    %v333 = vor.u32 %v331, %v332
    %v334 = vshll.u32 920167782, %v319
    %v335 = vshrl.u32 1326507024, %v320
    %v336 = vor.u32 %v334, %v335
    %vm337 = vcmp.lt.s32.totalorder %v318, 1
    %vm338 = vcmp.lt.s32.totalorder %v318, 2
    %vm339 = vcmp.lt.s32.totalorder %v318, 3
    %vm340 = vcmp.lt.s32.totalorder %v318, 4
    %v341 = vsel %vm337, %v321, %v324
    %v342 = vsel %vm340, %v330, 2102212464
    %v343 = vsel %vm339, %v327, %v342
    %v344 = vsel %vm338, %v341, %v343
    %v345 = vsel %vm337, %v324, %v327
    %v346 = vsel %vm340, %v333, 920167782
    %v347 = vsel %vm339, %v330, %v346
    %v348 = vsel %vm338, %v345, %v347
    %v349 = vsel %vm337, %v327, %v330
    %v350 = vsel %vm340, %v336, 1326507024
    %v351 = vsel %vm339, %v333, %v350
    %v352 = vsel %vm338, %v349, %v351
    %v353 = vshll.u32 %v313, 8
    %v354 = vmul.u32.u64.compose %v353, %v352
    %v355 = vextract.low.u32 %v354
    %v356 = vextract.high.u32 %v354
    %v357 = vmul.u32.u64.compose %v353, %v348
    %v358 = vextract.low.u32 %v357
    %v359 = vextract.high.u32 %v357
    %v360 = vmul.u32 %v353, %v344
    %v361 = vadd.s32 %v356, %v358
    %vm362 = vc.u32 %v356, %v358
    %v363 = vadd.s32 %v359, 1
    %v364 = vsel %vm362, %v363, %v359
    %v365 = vadd.s32 %v360, %v364
    %v366 = vadd.s32 %v365, 536870912
    %v367 = vshrl.u32 %v366, 30
    %v368 = vshll.u32 %v367, 30
    %v369 = vsub.s32 %v365, %v368
    %vm370 = vcmp.lt.s32.totalorder %v369, 0
    %v371 = vsub.s32 0, %v369
    %v372 = vsel %vm370, %v371, %v369
    %v373 = vclz %v372
    %v374 = vsub.s32 %v373, 2
    %vm375 = vcmp.gt.s32.totalorder 0, %v374
    %v376 = vsel %vm375, 0, %v374
    %v377 = vsub.s32 32, %v376
    %v378 = vshll.u32 %v369, %v376
    %v379 = vshrl.u32 %v361, %v377
    %v380 = vor.u32 %v378, %v379
    %v381 = vsub.s32 4294967266, %v376
    %v382 = vadd.s32 %v381, 127
    %v383 = vshll.u32 %v382, 23
    %v384 = vor.u32 4788187, %v383
    %v385 = vand.u32 2147483647, %v384
    %v387 = vcvt.s32.f32 %v380
    %v388 = vmul.f32 %v387, %v385
    %v389 = vxor.u32 %v388, 2147483648
    %v390 = vsel %vm307, %v389, %v388
    %v391 = vsub.s32 4, %v367
    %v392 = vsel %vm307, %v391, %v367
    %v393 = vsel %vm306, %v303, %v390
    %v394 = vsel %vm306, 0, %v392
    %v395 = vcosq.f32.pop %v393
    %v396 = vsinq.f32.pop %v393
    %vm397 = vweird.f32 %v303
    %v398 = vand.u32 %v394, 3
    %vm399 = vcmp.lt.s32.totalorder %v398, 2
    %vm400 = vcmp.eq.s32.totalorder %v398, 0
    %v401 = vxor.u32 %v396, 2147483648
    %v402 = vsel %vm400, %v395, %v401
    %vm403 = vcmp.eq.s32.totalorder %v398, 2
    %v404 = vxor.u32 %v395, 2147483648
    %v405 = vsel %vm403, %v404, %v396
    %v406 = vsel %vm399, %v402, %v405
    %v407 = vsel %vm397, nan, %v406
    %v408 = vand.u32 2147483647, %v304
    %vm409 = vcmp.le.f32.partialorder %v408, 0.7853982
    %vm410 = vcmp.lt.s32.totalorder %v304, 0
    %v411 = vand.u32 %v304, 2139095040
    %v412 = vshrl.u32 %v411, 23
    %v413 = vsub.s32 %v412, 127
    %v414 = vand.u32 2147483647, %v304
    %v415 = vand.u32 %v414, 8388607
    %v416 = vor.u32 %v415, 8388608
    %v417 = vsub.s32 0, %v416
    %v418 = vadd.s32 %v413, 1
    %vm419 = vcmp.gt.s32.totalorder %v418, 0
    %v420 = vsel %vm419, %v418, 0
    %v421 = vshrl.u32 %v420, 5
    %v422 = vand.u32 %v420, 31
    %v423 = vsub.s32 32, %v422
    %v424 = vshrl.u32 683565275, %v423
    %v425 = vshll.u32 683565275, %v422
    %v426 = vshrl.u32 2475754826, %v423
    %v427 = vor.u32 %v425, %v426
    %v428 = vshll.u32 2475754826, %v422
    %v429 = vshrl.u32 2131351028, %v423
    %v430 = vor.u32 %v428, %v429
    %v431 = vshll.u32 2131351028, %v422
    %v432 = vshrl.u32 2102212464, %v423
    %v433 = vor.u32 %v431, %v432
    %v434 = vshll.u32 2102212464, %v422
    %v435 = vshrl.u32 920167782, %v423
    %v436 = vor.u32 %v434, %v435
    %v437 = vshll.u32 920167782, %v422
    %v438 = vshrl.u32 1326507024, %v423
    %v439 = vor.u32 %v437, %v438
    %vm440 = vcmp.lt.s32.totalorder %v421, 1
    %vm441 = vcmp.lt.s32.totalorder %v421, 2
    %vm442 = vcmp.lt.s32.totalorder %v421, 3
    %vm443 = vcmp.lt.s32.totalorder %v421, 4
    %v444 = vsel %vm440, %v424, %v427
    %v445 = vsel %vm443, %v433, 2102212464
    %v446 = vsel %vm442, %v430, %v445
    %v447 = vsel %vm441, %v444, %v446
    %v448 = vsel %vm440, %v427, %v430
    %v449 = vsel %vm443, %v436, 920167782
    %v450 = vsel %vm442, %v433, %v449
    %v451 = vsel %vm441, %v448, %v450
    %v452 = vsel %vm440, %v430, %v433
    %v453 = vsel %vm443, %v439, 1326507024
    %v454 = vsel %vm442, %v436, %v453
    %v455 = vsel %vm441, %v452, %v454
    %v456 = vshll.u32 %v416, 8
    %v457 = vmul.u32.u64.compose %v456, %v455
    %v458 = vextract.low.u32 %v457
    %v459 = vextract.high.u32 %v457
    %v460 = vmul.u32.u64.compose %v456, %v451
    %v461 = vextract.low.u32 %v460
    %v462 = vextract.high.u32 %v460
    %v463 = vmul.u32 %v456, %v447
    %v464 = vadd.s32 %v459, %v461
    %vm465 = vc.u32 %v459, %v461
    %v466 = vadd.s32 %v462, 1
    %v467 = vsel %vm465, %v466, %v462
    %v468 = vadd.s32 %v463, %v467
    %v469 = vadd.s32 %v468, 536870912
    %v470 = vshrl.u32 %v469, 30
    %v471 = vshll.u32 %v470, 30
    %v472 = vsub.s32 %v468, %v471
    %vm473 = vcmp.lt.s32.totalorder %v472, 0
    %v474 = vsub.s32 0, %v472
    %v475 = vsel %vm473, %v474, %v472
    %v476 = vclz %v475
    %v477 = vsub.s32 %v476, 2
    %vm478 = vcmp.gt.s32.totalorder 0, %v477
    %v479 = vsel %vm478, 0, %v477
    %v480 = vsub.s32 32, %v479
    %v481 = vshll.u32 %v472, %v479
    %v482 = vshrl.u32 %v464, %v480
    %v483 = vor.u32 %v481, %v482
    %v484 = vsub.s32 4294967266, %v479
    %v485 = vadd.s32 %v484, 127
    %v486 = vshll.u32 %v485, 23
    %v487 = vor.u32 4788187, %v486
    %v488 = vand.u32 2147483647, %v487
    %v490 = vcvt.s32.f32 %v483
    %v491 = vmul.f32 %v490, %v488
    %v492 = vxor.u32 %v491, 2147483648
    %v493 = vsel %vm410, %v492, %v491
    %v494 = vsub.s32 4, %v470
    %v495 = vsel %vm410, %v494, %v470
    %v496 = vsel %vm409, %v304, %v493
    %v497 = vsel %vm409, 0, %v495
    %v498 = vcosq.f32.pop %v496
    %v499 = vsinq.f32.pop %v496
    %vm500 = vweird.f32 %v304
    %v501 = vand.u32 %v497, 3
    %vm502 = vcmp.lt.s32.totalorder %v501, 2
    %vm503 = vcmp.eq.s32.totalorder %v501, 0
    %v504 = vxor.u32 %v499, 2147483648
    %v505 = vsel %vm503, %v498, %v504
    %vm506 = vcmp.eq.s32.totalorder %v501, 2
    %v507 = vxor.u32 %v498, 2147483648
    %v508 = vsel %vm506, %v507, %v499
    %v509 = vsel %vm502, %v505, %v508
    %v510 = vsel %vm500, nan, %v509
    %v511 = vand.u32 2147483647, %v303
    %vm512 = vcmp.le.f32.partialorder %v511, 0.7853982
    %vm513 = vcmp.lt.s32.totalorder %v303, 0
    %v514 = vand.u32 %v303, 2139095040
    %v515 = vshrl.u32 %v514, 23
    %v516 = vsub.s32 %v515, 127
    %v517 = vand.u32 2147483647, %v303
    %v518 = vand.u32 %v517, 8388607
    %v519 = vor.u32 %v518, 8388608
    %v520 = vsub.s32 0, %v519
    %v521 = vadd.s32 %v516, 1
    %vm522 = vcmp.gt.s32.totalorder %v521, 0
    %v523 = vsel %vm522, %v521, 0
    %v524 = vshrl.u32 %v523, 5
    %v525 = vand.u32 %v523, 31
    %v526 = vsub.s32 32, %v525
    %v527 = vshrl.u32 683565275, %v526
    %v528 = vshll.u32 683565275, %v525
    %v529 = vshrl.u32 2475754826, %v526
    %v530 = vor.u32 %v528, %v529
    %v531 = vshll.u32 2475754826, %v525
    %v532 = vshrl.u32 2131351028, %v526
    %v533 = vor.u32 %v531, %v532
    %v534 = vshll.u32 2131351028, %v525
    %v535 = vshrl.u32 2102212464, %v526
    %v536 = vor.u32 %v534, %v535
    %v537 = vshll.u32 2102212464, %v525
    %v538 = vshrl.u32 920167782, %v526
    %v539 = vor.u32 %v537, %v538
    %v540 = vshll.u32 920167782, %v525
    %v541 = vshrl.u32 1326507024, %v526
    %v542 = vor.u32 %v540, %v541
    %vm543 = vcmp.lt.s32.totalorder %v524, 1
    %vm544 = vcmp.lt.s32.totalorder %v524, 2
    %vm545 = vcmp.lt.s32.totalorder %v524, 3
    %vm546 = vcmp.lt.s32.totalorder %v524, 4
    %v547 = vsel %vm543, %v527, %v530
    %v548 = vsel %vm546, %v536, 2102212464
    %v549 = vsel %vm545, %v533, %v548
    %v550 = vsel %vm544, %v547, %v549
    %v551 = vsel %vm543, %v530, %v533
    %v552 = vsel %vm546, %v539, 920167782
    %v553 = vsel %vm545, %v536, %v552
    %v554 = vsel %vm544, %v551, %v553
    %v555 = vsel %vm543, %v533, %v536
    %v556 = vsel %vm546, %v542, 1326507024
    %v557 = vsel %vm545, %v539, %v556
    %v558 = vsel %vm544, %v555, %v557
    %v559 = vshll.u32 %v519, 8
    %v560 = vmul.u32.u64.compose %v559, %v558
    %v561 = vextract.low.u32 %v560
    %v562 = vextract.high.u32 %v560
    %v563 = vmul.u32.u64.compose %v559, %v554
    %v564 = vextract.low.u32 %v563
    %v565 = vextract.high.u32 %v563
    %v566 = vmul.u32 %v559, %v550
    %v567 = vadd.s32 %v562, %v564
    %vm568 = vc.u32 %v562, %v564
    %v569 = vadd.s32 %v565, 1
    %v570 = vsel %vm568, %v569, %v565
    %v571 = vadd.s32 %v566, %v570
    %v572 = vadd.s32 %v571, 536870912
    %v573 = vshrl.u32 %v572, 30
    %v574 = vshll.u32 %v573, 30
    %v575 = vsub.s32 %v571, %v574
    %vm576 = vcmp.lt.s32.totalorder %v575, 0
    %v577 = vsub.s32 0, %v575
    %v578 = vsel %vm576, %v577, %v575
    %v579 = vclz %v578
    %v580 = vsub.s32 %v579, 2
    %vm581 = vcmp.gt.s32.totalorder 0, %v580
    %v582 = vsel %vm581, 0, %v580
    %v583 = vsub.s32 32, %v582
    %v584 = vshll.u32 %v575, %v582
    %v585 = vshrl.u32 %v567, %v583
    %v586 = vor.u32 %v584, %v585
    %v587 = vsub.s32 4294967266, %v582
    %v588 = vadd.s32 %v587, 127
    %v589 = vshll.u32 %v588, 23
    %v590 = vor.u32 4788187, %v589
    %v591 = vand.u32 2147483647, %v590
    %v593 = vcvt.s32.f32 %v586
    %v594 = vmul.f32 %v593, %v591
    %v595 = vxor.u32 %v594, 2147483648
    %v596 = vsel %vm513, %v595, %v594
    %v597 = vsub.s32 4, %v573
    %v598 = vsel %vm513, %v597, %v573
    %v599 = vsel %vm512, %v303, %v596
    %v600 = vsel %vm512, 0, %v598
    %v601 = vcosq.f32.pop %v599
    %v602 = vsinq.f32.pop %v599
    %vm603 = vweird.f32 %v303
    %v604 = vadd.s32 %v600, 3
    %v605 = vand.u32 %v604, 3
    %vm606 = vcmp.lt.s32.totalorder %v605, 2
    %vm607 = vcmp.eq.s32.totalorder %v605, 0
    %v608 = vxor.u32 %v602, 2147483648
    %v609 = vsel %vm607, %v601, %v608
    %vm610 = vcmp.eq.s32.totalorder %v605, 2
    %v611 = vxor.u32 %v601, 2147483648
    %v612 = vsel %vm610, %v611, %v602
    %v613 = vsel %vm606, %v609, %v612
    %v614 = vsel %vm603, nan, %v613
    %v615 = vand.u32 2147483647, %v304
    %vm616 = vcmp.le.f32.partialorder %v615, 0.7853982
    %vm617 = vcmp.lt.s32.totalorder %v304, 0
    %v618 = vand.u32 %v304, 2139095040
    %v619 = vshrl.u32 %v618, 23
    %v620 = vsub.s32 %v619, 127
    %v621 = vand.u32 2147483647, %v304
    %v622 = vand.u32 %v621, 8388607
    %v623 = vor.u32 %v622, 8388608
    %v624 = vsub.s32 0, %v623
    %v625 = vadd.s32 %v620, 1
    %vm626 = vcmp.gt.s32.totalorder %v625, 0
    %v627 = vsel %vm626, %v625, 0
    %v628 = vshrl.u32 %v627, 5
    %v629 = vand.u32 %v627, 31
    %v630 = vsub.s32 32, %v629
    %v631 = vshrl.u32 683565275, %v630
    %v632 = vshll.u32 683565275, %v629
    %v633 = vshrl.u32 2475754826, %v630
    %v634 = vor.u32 %v632, %v633
    %v635 = vshll.u32 2475754826, %v629
    %v636 = vshrl.u32 2131351028, %v630
    %v637 = vor.u32 %v635, %v636
    %v638 = vshll.u32 2131351028, %v629
    %v639 = vshrl.u32 2102212464, %v630
    %v640 = vor.u32 %v638, %v639
    %v641 = vshll.u32 2102212464, %v629
    %v642 = vshrl.u32 920167782, %v630
    %v643 = vor.u32 %v641, %v642
    %v644 = vshll.u32 920167782, %v629
    %v645 = vshrl.u32 1326507024, %v630
    %v646 = vor.u32 %v644, %v645
    %vm647 = vcmp.lt.s32.totalorder %v628, 1
    %vm648 = vcmp.lt.s32.totalorder %v628, 2
    %vm649 = vcmp.lt.s32.totalorder %v628, 3
    %vm650 = vcmp.lt.s32.totalorder %v628, 4
    %v651 = vsel %vm647, %v631, %v634
    %v652 = vsel %vm650, %v640, 2102212464
    %v653 = vsel %vm649, %v637, %v652
    %v654 = vsel %vm648, %v651, %v653
    %v655 = vsel %vm647, %v634, %v637
    %v656 = vsel %vm650, %v643, 920167782
    %v657 = vsel %vm649, %v640, %v656
    %v658 = vsel %vm648, %v655, %v657
    %v659 = vsel %vm647, %v637, %v640
    %v660 = vsel %vm650, %v646, 1326507024
    %v661 = vsel %vm649, %v643, %v660
    %v662 = vsel %vm648, %v659, %v661
    %v663 = vshll.u32 %v623, 8
    %v664 = vmul.u32.u64.compose %v663, %v662
    %v665 = vextract.low.u32 %v664
    %v666 = vextract.high.u32 %v664
    %v667 = vmul.u32.u64.compose %v663, %v658
    %v668 = vextract.low.u32 %v667
    %v669 = vextract.high.u32 %v667
    %v670 = vmul.u32 %v663, %v654
    %v671 = vadd.s32 %v666, %v668
    %vm672 = vc.u32 %v666, %v668
    %v673 = vadd.s32 %v669, 1
    %v674 = vsel %vm672, %v673, %v669
    %v675 = vadd.s32 %v670, %v674
    %v676 = vadd.s32 %v675, 536870912
    %v677 = vshrl.u32 %v676, 30
    %v678 = vshll.u32 %v677, 30
    %v679 = vsub.s32 %v675, %v678
    %vm680 = vcmp.lt.s32.totalorder %v679, 0
    %v681 = vsub.s32 0, %v679
    %v682 = vsel %vm680, %v681, %v679
    %v683 = vclz %v682
    %v684 = vsub.s32 %v683, 2
    %vm685 = vcmp.gt.s32.totalorder 0, %v684
    %v686 = vsel %vm685, 0, %v684
    %v687 = vsub.s32 32, %v686
    %v688 = vshll.u32 %v679, %v686
    %v689 = vshrl.u32 %v671, %v687
    %v690 = vor.u32 %v688, %v689
    %v691 = vsub.s32 4294967266, %v686
    %v692 = vadd.s32 %v691, 127
    %v693 = vshll.u32 %v692, 23
    %v694 = vor.u32 4788187, %v693
    %v695 = vand.u32 2147483647, %v694
    %v697 = vcvt.s32.f32 %v690
    %v698 = vmul.f32 %v697, %v695
    %v699 = vxor.u32 %v698, 2147483648
    %v700 = vsel %vm617, %v699, %v698
    %v701 = vsub.s32 4, %v677
    %v702 = vsel %vm617, %v701, %v677
    %v703 = vsel %vm616, %v304, %v700
    %v704 = vsel %vm616, 0, %v702
    %v705 = vcosq.f32.pop %v703
    %v706 = vsinq.f32.pop %v703
    %vm707 = vweird.f32 %v304
    %v708 = vadd.s32 %v704, 3
    %v709 = vand.u32 %v708, 3
    %vm710 = vcmp.lt.s32.totalorder %v709, 2
    %vm711 = vcmp.eq.s32.totalorder %v709, 0
    %v712 = vxor.u32 %v706, 2147483648
    %v713 = vsel %vm711, %v705, %v712
    %vm714 = vcmp.eq.s32.totalorder %v709, 2
    %v715 = vxor.u32 %v705, 2147483648
    %v716 = vsel %vm714, %v715, %v706
    %v717 = vsel %vm710, %v713, %v716
    %v718 = vsel %vm707, nan, %v717
    %v719 = vsub.f32 %v614, %v407
    %v720 = vsub.f32 %v718, %v510
    %v721 = vld [vmem:[%s2] sm:$0xff]
    %v722 = vlaneseq
    %v723 = vshrl.u32 %v722, 7
    %v724 = vsub.s32 0, %v723
    %v725 = vrot.slane %v721, %v724
    %727 = vset.pattern.permute.xlu0 0
    %728 = vperm.xlu0 %727, %v719
    %v729 = vpop.permute.xlu0 %728
    %732 = vset.pattern.permute.xlu0 0
    %733 = vperm.xlu0 %732, %v720
    %v734 = vpop.permute.xlu0 %733
    %v736 = vmul.f32 %v725, %v729
    %v737 = vmul.f32 %v725, %v734
    %739 = vset.pattern.permute.xlu0 0
    %740 = vperm.xlu0 %739, %v407
    %v741 = vpop.permute.xlu0 %740
    %744 = vset.pattern.permute.xlu0 0
    %745 = vperm.xlu0 %744, %v510
    %v746 = vpop.permute.xlu0 %745
    %v748 = vadd.f32 %v741, %v736
    %v749 = vadd.f32 %v746, %v737
    %v750 = vlaneseq
    %v751 = vshrl.u32 %v750, 7
    %v752 = vsub.s32 1, %v751
    %v753 = vrot.slane %v721, %v752
    %754 = vset.pattern.permute.xlu0 1
    %755 = vperm.xlu0 %754, %v719
    %v756 = vpop.permute.xlu0 %755
    %758 = vset.pattern.permute.xlu0 1
    %759 = vperm.xlu0 %758, %v720
    %v760 = vpop.permute.xlu0 %759
    %v762 = vmul.f32 %v753, %v756
    %v763 = vmul.f32 %v753, %v760
    %764 = vset.pattern.permute.xlu0 1
    %765 = vperm.xlu0 %764, %v407
    %v766 = vpop.permute.xlu0 %765
    %768 = vset.pattern.permute.xlu0 1
    %769 = vperm.xlu0 %768, %v510
    %v770 = vpop.permute.xlu0 %769
    %v772 = vadd.f32 %v766, %v762
    %v773 = vadd.f32 %v770, %v763
    %v774 = vmul.f32 %v748, %v772
    %v775 = vmul.f32 %v749, %v773
    %v776 = vlaneseq
    %v777 = vshrl.u32 %v776, 7
    %v778 = vsub.s32 2, %v777
    %v779 = vrot.slane %v721, %v778
    %780 = vset.pattern.permute.xlu0 2
    %781 = vperm.xlu0 %780, %v719
    %v782 = vpop.permute.xlu0 %781
    %784 = vset.pattern.permute.xlu0 2
    %785 = vperm.xlu0 %784, %v720
    %v786 = vpop.permute.xlu0 %785
    %v788 = vmul.f32 %v779, %v782
    %v789 = vmul.f32 %v779, %v786
    %790 = vset.pattern.permute.xlu0 2
    %791 = vperm.xlu0 %790, %v407
    %v792 = vpop.permute.xlu0 %791
    %794 = vset.pattern.permute.xlu0 2
    %795 = vperm.xlu0 %794, %v510
    %v796 = vpop.permute.xlu0 %795
    %v798 = vadd.f32 %v792, %v788
    %v799 = vadd.f32 %v796, %v789
    %v800 = vmul.f32 %v774, %v798
    %v801 = vmul.f32 %v775, %v799
    %v802 = vlaneseq
    %v803 = vshrl.u32 %v802, 7
    %v804 = vsub.s32 3, %v803
    %v805 = vrot.slane %v721, %v804
    %806 = vset.pattern.permute.xlu0 3
    %807 = vperm.xlu0 %806, %v719
    %v808 = vpop.permute.xlu0 %807
    %810 = vset.pattern.permute.xlu0 3
    %811 = vperm.xlu0 %810, %v720
    %v812 = vpop.permute.xlu0 %811
    %v814 = vmul.f32 %v805, %v808
    %v815 = vmul.f32 %v805, %v812
    %816 = vset.pattern.permute.xlu0 3
    %817 = vperm.xlu0 %816, %v407
    %v818 = vpop.permute.xlu0 %817
    %820 = vset.pattern.permute.xlu0 3
    %821 = vperm.xlu0 %820, %v510
    %v822 = vpop.permute.xlu0 %821
    %v824 = vadd.f32 %v818, %v814
    %v825 = vadd.f32 %v822, %v815
    %v826 = vmul.f32 %v800, %v824
    %v827 = vmul.f32 %v801, %v825
    %v828 = vlaneseq
    %v829 = vshrl.u32 %v828, 7
    %v830 = vsub.s32 4, %v829
    %v831 = vrot.slane %v721, %v830
    %832 = vset.pattern.permute.xlu0 4
    %833 = vperm.xlu0 %832, %v719
    %v834 = vpop.permute.xlu0 %833
    %836 = vset.pattern.permute.xlu0 4
    %837 = vperm.xlu0 %836, %v720
    %v838 = vpop.permute.xlu0 %837
    %v840 = vmul.f32 %v831, %v834
    %v841 = vmul.f32 %v831, %v838
    %842 = vset.pattern.permute.xlu0 4
    %843 = vperm.xlu0 %842, %v407
    %v844 = vpop.permute.xlu0 %843
    %846 = vset.pattern.permute.xlu0 4
    %847 = vperm.xlu0 %846, %v510
    %v848 = vpop.permute.xlu0 %847
    %v850 = vadd.f32 %v844, %v840
    %v851 = vadd.f32 %v848, %v841
    %v852 = vmul.f32 %v826, %v850
    %v853 = vmul.f32 %v827, %v851
    %v854 = vlaneseq
    %v855 = vshrl.u32 %v854, 7
    %v856 = vsub.s32 5, %v855
    %v857 = vrot.slane %v721, %v856
    %858 = vset.pattern.permute.xlu0 5
    %859 = vperm.xlu0 %858, %v719
    %v860 = vpop.permute.xlu0 %859
    %862 = vset.pattern.permute.xlu0 5
    %863 = vperm.xlu0 %862, %v720
    %v864 = vpop.permute.xlu0 %863
    %v866 = vmul.f32 %v857, %v860
    %v867 = vmul.f32 %v857, %v864
    %868 = vset.pattern.permute.xlu0 5
    %869 = vperm.xlu0 %868, %v407
    %v870 = vpop.permute.xlu0 %869
    %872 = vset.pattern.permute.xlu0 5
    %873 = vperm.xlu0 %872, %v510
    %v874 = vpop.permute.xlu0 %873
    %v876 = vadd.f32 %v870, %v866
    %v877 = vadd.f32 %v874, %v867
    %v878 = vmul.f32 %v852, %v876
    %v879 = vmul.f32 %v853, %v877
    %v880 = vld [vmem:[%s3] sm:$0xff]
    %v881 = vld [vmem:[%s3 + $0x8] sm:$0xff]
    %v882 = vld [vmem:[%s3 + $0x10] sm:$0xff]
    %v883 = vld [vmem:[%s3 + $0x18] sm:$0xff]
    %v884 = vld [vmem:[%s3 + $0x20] sm:$0xff]
    %v885 = vld [vmem:[%s3 + $0x28] sm:$0xff]
    %v886 = vld [vmem:[%s3 + $0x30] sm:$0xff]
    %v887 = vld [vmem:[%s3 + $0x38] sm:$0xff]
    %vm888 = vcmask 523264
    %v890 = vsel %vm888, %v878, 0
    %v893 = vsel %vm888, %v879, 0
    %895 = vmatprep.subr.mxu0 0.0
    %896 = vmatpush1.msra.mxu0 %v880
    %897 = vmatprep.subr.mxu0 0.0
    %898 = vmatpush1.msra.mxu0 %v881
    %899 = vmatprep.subr.mxu0 0.0
    %900 = vmatpush1.msra.mxu0 %v882
    %901 = vmatprep.subr.mxu0 0.0
    %902 = vmatpush1.msra.mxu0 %v883
    %903 = vmatprep.subr.mxu0 0.0
    %904 = vmatpush1.msra.mxu0 %v884
    %905 = vmatprep.subr.mxu0 0.0
    %906 = vmatpush1.msra.mxu0 %v885
    %907 = vmatprep.subr.mxu0 0.0
    %908 = vmatpush1.msra.mxu0 %v886
    %909 = vmatprep.subr.mxu0 0.0
    %910 = vmatpush1.msra.mxu0 %v887
    %911 = vmatprep.subr.mxu0 0.0
    %912 = vmatpush1.msra.mxu0 0.0
    %913 = vmatprep.subr.mxu0 0.0
    %914 = vmatpush1.msra.mxu0 0.0
    %915 = vmatprep.subr.mxu0 0.0
    %916 = vmatpush1.msra.mxu0 0.0
    %917 = vmatprep.subr.mxu0 0.0
    %918 = vmatpush1.msra.mxu0 0.0
    %919 = vmatprep.subr.mxu0 0.0
    %920 = vmatpush1.msra.mxu0 0.0
    %921 = vmatprep.subr.mxu0 0.0
    %922 = vmatpush1.msra.mxu0 0.0
    %923 = vmatprep.subr.mxu0 0.0
    %924 = vmatpush1.msra.mxu0 0.0
    %925 = vmatprep.subr.mxu0 0.0
    %926 = vmatpush1.msra.mxu0 0.0
    %927 = vmatprep.subr.mxu0 0.0
    %928 = vmatpush1.msra.mxu0 0.0
    %929 = vmatprep.subr.mxu0 0.0
    %930 = vmatpush1.msra.mxu0 0.0
    %931 = vmatprep.subr.mxu0 0.0
    %932 = vmatpush1.msra.mxu0 0.0
    %933 = vmatprep.subr.mxu0 0.0
    %934 = vmatpush1.msra.mxu0 0.0
    %935 = vmatprep.subr.mxu0 0.0
    %936 = vmatpush1.msra.mxu0 0.0
    %937 = vmatprep.subr.mxu0 0.0
    %938 = vmatpush1.msra.mxu0 0.0
    %939 = vmatprep.subr.mxu0 0.0
    %940 = vmatpush1.msra.mxu0 0.0
    %941 = vmatprep.subr.mxu0 0.0
    %942 = vmatpush1.msra.mxu0 0.0
    %943 = vmatprep.subr.mxu0 0.0
    %944 = vmatpush1.msra.mxu0 0.0
    %945 = vmatprep.subr.mxu0 0.0
    %946 = vmatpush1.msra.mxu0 0.0
    %947 = vmatprep.subr.mxu0 0.0
    %948 = vmatpush1.msra.mxu0 0.0
    %949 = vmatprep.subr.mxu0 0.0
    %950 = vmatpush1.msra.mxu0 0.0
    %951 = vmatprep.subr.mxu0 0.0
    %952 = vmatpush1.msra.mxu0 0.0
    %953 = vmatprep.subr.mxu0 0.0
    %954 = vmatpush1.msra.mxu0 0.0
    %955 = vmatprep.subr.mxu0 0.0
    %956 = vmatpush1.msra.mxu0 0.0
    %957 = vmatprep.subr.mxu0 0.0
    %958 = vmatpush1.msra.mxu0 0.0
    %959 = vmatprep.mubr.f32.mxu0 0.0
    %960 = vmatmul.mubr.f32.gmra.mrb[0].mxu0 %v890
    %v961 = vpop.f32.mrb[0].mxu0
    %v962 = vadd.f32 0.0, %v961
    %v963 = vpop.f32.mrb[0].mxu0
    %964 = vmatprep.mubr.f32.mxu0 0.0
    %965 = vmatmul.mubr.f32.gmra.mrb[0].mxu0 %v893
    %v966 = vpop.f32.mrb[0].mxu0
    %v967 = vadd.f32 0.0, %v966
    %v968 = vpop.f32.mrb[0].mxu0
    %969 = vdwg.mxu0
    %v970 = vld [vmem:[%s4] sm:$0xff]
    %v971 = vld [vmem:[%s4 + $0x8] sm:$0xff]
    %v972 = vld [vmem:[%s4 + $0x10] sm:$0xff]
    %v973 = vld [vmem:[%s4 + $0x18] sm:$0xff]
    %v974 = vld [vmem:[%s4 + $0x20] sm:$0xff]
    %v975 = vld [vmem:[%s4 + $0x28] sm:$0xff]
    %v976 = vld [vmem:[%s4 + $0x30] sm:$0xff]
    %v977 = vld [vmem:[%s4 + $0x38] sm:$0xff]
    %v978 = vld [vmem:[%s4 + $0x40] sm:$0xff]
    %v979 = vld [vmem:[%s4 + $0x48] sm:$0xff]
    %v980 = vld [vmem:[%s4 + $0x50] sm:$0xff]
    %v981 = vld [vmem:[%s4 + $0x58] sm:$0xff]
    %v982 = vld [vmem:[%s4 + $0x60] sm:$0xff]
    %v983 = vld [vmem:[%s4 + $0x68] sm:$0xff]
    %v984 = vld [vmem:[%s4 + $0x70] sm:$0xff]
    %v985 = vld [vmem:[%s4 + $0x78] sm:$0xff]
    %v986 = vld [vmem:[%s4 + $0x80] sm:$0xff]
    %v987 = vld [vmem:[%s4 + $0x88] sm:$0xff]
    %v988 = vld [vmem:[%s4 + $0x90] sm:$0xff]
    %v989 = vld [vmem:[%s4 + $0x98] sm:$0xff]
    %v990 = vmul.f32 %v962, %v962
    %v991 = vmul.f32 %v967, %v967
    %v992 = vlaneseq
    %v993 = vshrl.u32 %v992, 7
    %v994 = vsub.s32 0, %v993
    %v995 = vrot.slane %v986, %v994
    %996 = vmatprep.subr.mxu0 0.0
    %997 = vmatpush1.msra.mxu0 %v970
    %998 = vmatprep.subr.mxu0 0.0
    %999 = vmatpush1.msra.mxu0 %v971
    %1000 = vmatprep.subr.mxu0 0.0
    %1001 = vmatpush1.msra.mxu0 %v972
    %1002 = vmatprep.subr.mxu0 0.0
    %1003 = vmatpush1.msra.mxu0 %v973
    %1004 = vmatprep.subr.mxu0 0.0
    %1005 = vmatpush1.msra.mxu0 %v974
    %1006 = vmatprep.subr.mxu0 0.0
    %1007 = vmatpush1.msra.mxu0 %v975
    %1008 = vmatprep.subr.mxu0 0.0
    %1009 = vmatpush1.msra.mxu0 %v976
    %1010 = vmatprep.subr.mxu0 0.0
    %1011 = vmatpush1.msra.mxu0 %v977
    %1012 = vmatprep.subr.mxu0 0.0
    %1013 = vmatpush1.msra.mxu0 %v978
    %1014 = vmatprep.subr.mxu0 0.0
    %1015 = vmatpush1.msra.mxu0 %v979
    %1016 = vmatprep.subr.mxu0 0.0
    %1017 = vmatpush1.msra.mxu0 %v980
    %1018 = vmatprep.subr.mxu0 0.0
    %1019 = vmatpush1.msra.mxu0 %v981
    %1020 = vmatprep.subr.mxu0 0.0
    %1021 = vmatpush1.msra.mxu0 %v982
    %1022 = vmatprep.subr.mxu0 0.0
    %1023 = vmatpush1.msra.mxu0 %v983
    %1024 = vmatprep.subr.mxu0 0.0
    %1025 = vmatpush1.msra.mxu0 %v984
    %1026 = vmatprep.subr.mxu0 0.0
    %1027 = vmatpush1.msra.mxu0 %v985
    %1028 = vmatprep.subr.mxu0 0.0
    %1029 = vmatpush1.msra.mxu0 0.0
    %1030 = vmatprep.subr.mxu0 0.0
    %1031 = vmatpush1.msra.mxu0 0.0
    %1032 = vmatprep.subr.mxu0 0.0
    %1033 = vmatpush1.msra.mxu0 0.0
    %1034 = vmatprep.subr.mxu0 0.0
    %1035 = vmatpush1.msra.mxu0 0.0
    %1036 = vmatprep.subr.mxu0 0.0
    %1037 = vmatpush1.msra.mxu0 0.0
    %1038 = vmatprep.subr.mxu0 0.0
    %1039 = vmatpush1.msra.mxu0 0.0
    %1040 = vmatprep.subr.mxu0 0.0
    %1041 = vmatpush1.msra.mxu0 0.0
    %1042 = vmatprep.subr.mxu0 0.0
    %1043 = vmatpush1.msra.mxu0 0.0
    %1044 = vmatprep.subr.mxu0 0.0
    %1045 = vmatpush1.msra.mxu0 0.0
    %1046 = vmatprep.subr.mxu0 0.0
    %1047 = vmatpush1.msra.mxu0 0.0
    %1048 = vmatprep.subr.mxu0 0.0
    %1049 = vmatpush1.msra.mxu0 0.0
    %1050 = vmatprep.subr.mxu0 0.0
    %1051 = vmatpush1.msra.mxu0 0.0
    %1052 = vmatprep.subr.mxu0 0.0
    %1053 = vmatpush1.msra.mxu0 0.0
    %1054 = vmatprep.subr.mxu0 0.0
    %1055 = vmatpush1.msra.mxu0 0.0
    %1056 = vmatprep.subr.mxu0 0.0
    %1057 = vmatpush1.msra.mxu0 0.0
    %1058 = vmatprep.subr.mxu0 0.0
    %1059 = vmatpush1.msra.mxu0 0.0
    %1060 = vmatprep.mubr.f32.mxu0 0.0
    %1061 = vmatmul.mubr.f32.gmra.mrb[0].mxu0 %v990
    %v1062 = vpop.f32.mrb[0].mxu0
    %v1063 = vadd.f32 %v995, %v1062
    %v1064 = vpop.f32.mrb[0].mxu0
    %1065 = vmatprep.mubr.f32.mxu0 0.0
    %1066 = vmatmul.mubr.f32.gmra.mrb[0].mxu0 %v991
    %v1067 = vpop.f32.mrb[0].mxu0
    %v1068 = vadd.f32 %v995, %v1067
    %v1069 = vpop.f32.mrb[0].mxu0
    %1070 = vdwg.mxu0
    %v1071 = vmax.f32 %v1063, 0.0
    %v1072 = vmax.f32 %v1068, 0.0
    %v1073 = vlaneseq
    %v1074 = vshrl.u32 %v1073, 7
    %v1075 = vsub.s32 0, %v1074
    %v1076 = vrot.slane %v989, %v1075
    %v1078 = vsel %vm219, %v1071, 0
    %v1081 = vsel %vm219, %v1072, 0
    %1083 = vmatprep.subr.mxu0 0.0
    %1084 = vmatpush1.msra.mxu0 %v987
    %1085 = vmatprep.subr.mxu0 0.0
    %1086 = vmatpush1.msra.mxu0 %v988
    %1087 = vmatprep.subr.mxu0 0.0
    %1088 = vmatpush1.msra.mxu0 0.0
    %1089 = vmatprep.subr.mxu0 0.0
    %1090 = vmatpush1.msra.mxu0 0.0
    %1091 = vmatprep.subr.mxu0 0.0
    %1092 = vmatpush1.msra.mxu0 0.0
    %1093 = vmatprep.subr.mxu0 0.0
    %1094 = vmatpush1.msra.mxu0 0.0
    %1095 = vmatprep.subr.mxu0 0.0
    %1096 = vmatpush1.msra.mxu0 0.0
    %1097 = vmatprep.subr.mxu0 0.0
    %1098 = vmatpush1.msra.mxu0 0.0
    %1099 = vmatprep.subr.mxu0 0.0
    %1100 = vmatpush1.msra.mxu0 0.0
    %1101 = vmatprep.subr.mxu0 0.0
    %1102 = vmatpush1.msra.mxu0 0.0
    %1103 = vmatprep.subr.mxu0 0.0
    %1104 = vmatpush1.msra.mxu0 0.0
    %1105 = vmatprep.subr.mxu0 0.0
    %1106 = vmatpush1.msra.mxu0 0.0
    %1107 = vmatprep.subr.mxu0 0.0
    %1108 = vmatpush1.msra.mxu0 0.0
    %1109 = vmatprep.subr.mxu0 0.0
    %1110 = vmatpush1.msra.mxu0 0.0
    %1111 = vmatprep.subr.mxu0 0.0
    %1112 = vmatpush1.msra.mxu0 0.0
    %1113 = vmatprep.subr.mxu0 0.0
    %1114 = vmatpush1.msra.mxu0 0.0
    %1115 = vmatprep.subr.mxu0 0.0
    %1116 = vmatpush1.msra.mxu0 0.0
    %1117 = vmatprep.subr.mxu0 0.0
    %1118 = vmatpush1.msra.mxu0 0.0
    %1119 = vmatprep.subr.mxu0 0.0
    %1120 = vmatpush1.msra.mxu0 0.0
    %1121 = vmatprep.subr.mxu0 0.0
    %1122 = vmatpush1.msra.mxu0 0.0
    %1123 = vmatprep.subr.mxu0 0.0
    %1124 = vmatpush1.msra.mxu0 0.0
    %1125 = vmatprep.subr.mxu0 0.0
    %1126 = vmatpush1.msra.mxu0 0.0
    %1127 = vmatprep.subr.mxu0 0.0
    %1128 = vmatpush1.msra.mxu0 0.0
    %1129 = vmatprep.subr.mxu0 0.0
    %1130 = vmatpush1.msra.mxu0 0.0
    %1131 = vmatprep.subr.mxu0 0.0
    %1132 = vmatpush1.msra.mxu0 0.0
    %1133 = vmatprep.subr.mxu0 0.0
    %1134 = vmatpush1.msra.mxu0 0.0
    %1135 = vmatprep.subr.mxu0 0.0
    %1136 = vmatpush1.msra.mxu0 0.0
    %1137 = vmatprep.subr.mxu0 0.0
    %1138 = vmatpush1.msra.mxu0 0.0
    %1139 = vmatprep.subr.mxu0 0.0
    %1140 = vmatpush1.msra.mxu0 0.0
    %1141 = vmatprep.subr.mxu0 0.0
    %1142 = vmatpush1.msra.mxu0 0.0
    %1143 = vmatprep.subr.mxu0 0.0
    %1144 = vmatpush1.msra.mxu0 0.0
    %1145 = vmatprep.subr.mxu0 0.0
    %1146 = vmatpush1.msra.mxu0 0.0
    %1147 = vmatprep.mubr.f32.mxu0 0.0
    %1148 = vmatmul.mubr.f32.gmra.mrb[0].mxu0 %v1078
    %v1149 = vpop.f32.mrb[0].mxu0
    %v1150 = vadd.f32 %v1076, %v1149
    %v1151 = vpop.f32.mrb[0].mxu0
    %1152 = vmatprep.mubr.f32.mxu0 0.0
    %1153 = vmatmul.mubr.f32.gmra.mrb[0].mxu0 %v1081
    %v1154 = vpop.f32.mrb[0].mxu0
    %v1155 = vadd.f32 %v1076, %v1154
    %v1156 = vpop.f32.mrb[0].mxu0
    %1157 = vdwg.mxu0
    %1158 = vst.msk [vmem:[#allocation2] sm:$0xff] %vm219, %v1150
    %1159 = vst.msk [vmem:[#allocation2 + $0x8] sm:$0xff] %vm219, %v1155
    // Predicated region
    $region22: #{tpu_custom_call.1} parent=1 // pred_check
      _
    $region23: #{tpu_custom_call.1} parent=1 // pred_check_branch
      %1161 = sbr.rel (0) target = $region25
    $region24: #{tpu_custom_call.1} parent=1 // pred_region
      %s1163 = ssub.s32 256, 256
      %1164 = vsyncadd [#allocation3], %s1163
      %s1165 = sshll.u32 [#allocation2], 4
      %s1166 = int_to_ptr.vmem [resolvable:$true] %s1165
      %1171 = dma.vmem_to_hbm [thread:$0]  %s1166, 256, %s5, [#allocation3], 128, 128, 8
    $region25: #{tpu_custom_call.1} parent=1 // pred_fallthru
      _
    // Predicated region
    $region26: #{tpu_custom_call.1} parent=1 // pred_check
      _
    $region27: #{tpu_custom_call.1} parent=1 // pred_check_branch
      %1173 = sbr.rel (0) target = $region29
    $region28: #{tpu_custom_call.1} parent=1 // pred_region
      %1174 = dma.done [#allocation3], 256
    $region29: #{tpu_custom_call.1} parent=1 // pred_fallthru
      _
    %1175 = vsyncpa [#allocation3], 1

</llo_original>
